<compile_context>
chip_gen: v5e
topology: v5e:2x2
jax: 0.10.0
libtpu: 0.0.40
codegen_flags: <defaults>
</compile_context>

<pallas_src>
import functools

import jax
import jax.numpy as jnp
from jax.experimental import pallas as pl
from jax.experimental.pallas import tpu as pltpu

EPS = 1e-5          # nn.BatchNorm1d default eps
LANE = 128          # TPU lane width


def _round_up(n, m):
    return (n + m - 1) // m * m


def _device_kind():
    try:
        return jax.devices()[0].device_kind.lower()
    except Exception:  # pragma: no cover - defensive
        return ""


def _pick_tile_m(m):
    # v7x has only 64 MiB VMEM per TensorCore (vs 128 MiB on v5e/v6e): halve
    # the row-tile cap there. Multiple of 16 keeps bf16 sublane packing clean.
    cap = 256 if "v7" in _device_kind() else 512
    return min(cap, _round_up(m, 16))


def _vmem_limit_bytes():
    # Raise the scoped-VMEM default (16 MiB v5e / 32 MiB v6e,v7x) but leave
    # headroom below physical VMEM (64 MiB/TC on v7x, 128 MiB on v5e/v6e).
    return (32 if "v7" in _device_kind() else 64) * 1024 * 1024


# ---------------------------------------------------------------------------
# Pass 1: per-feature sum / sum-of-squares of x over the (padded) batch axis.
# Grid-resident (2, D) accumulator => M axis must be "arbitrary".
# ---------------------------------------------------------------------------
def _colstats_kernel(x_ref, stat_ref):
    i = pl.program_id(0)
    x = x_ref[...].astype(jnp.float32)
    part = jnp.concatenate(
        [jnp.sum(x, axis=0, keepdims=True),
         jnp.sum(x * x, axis=0, keepdims=True)], axis=0)

    @pl.when(i == 0)
    def _():
        stat_ref[...] = jnp.zeros_like(stat_ref)

    stat_ref[...] += part


# ---------------------------------------------------------------------------
# Pass 2: h = relu(norm_base(x, c)); net1 = base(h); accumulate net1 stats.
# ---------------------------------------------------------------------------
def _mid_kernel(x_ref, c_ref, xstat_ref, w_gb_ref, b_gb_ref, bw_ref, bb_ref,
                net1_ref, nstat_ref, *, x_dim, x_pad, tile_m, true_m):
    i = pl.program_id(0)
    f32, bf16 = jnp.float32, jnp.bfloat16

    x = x_ref[...].astype(f32)
    # Fused gamma/beta projection (one MXU dot instead of two); gamma occupies
    # lanes [0, x_dim), beta starts at the next 128-lane tile (x_pad).
    gb = (jnp.dot(c_ref[...].astype(bf16), w_gb_ref[...],
                  preferred_element_type=f32) + b_gb_ref[...])
    gamma = gb[:, :x_dim]
    beta = gb[:, x_pad:x_pad + x_dim]

    # Train-mode BatchNorm1d(affine=False) with full-batch statistics.
    x_hat = (x - xstat_ref[0:1, :]) * xstat_ref[1:2, :]
    h = jnp.maximum(gamma * x_hat + beta, 0.0)                       # ReLU

    net1 = (jnp.dot(h.astype(bf16), bw_ref[...],
                    preferred_element_type=f32) + bb_ref[...])

    # Zero rows that are pure batch padding so they neither pollute the
    # net1 BatchNorm statistics nor the stored intermediate.
    row = i * tile_m + jax.lax.broadcasted_iota(jnp.int32, (tile_m, 1), 0)
    net1 = jnp.where(row < true_m, net1, 0.0)

    net1_ref[...] = net1.astype(net1_ref.dtype)

    part = jnp.concatenate(
        [jnp.sum(net1, axis=0, keepdims=True),
         jnp.sum(net1 * net1, axis=0, keepdims=True)], axis=0)

    @pl.when(i == 0)
    def _():
        nstat_ref[...] = jnp.zeros_like(nstat_ref)

    nstat_ref[...] += part


# ---------------------------------------------------------------------------
# Pass 3: dx = residual(relu(norm_residual(net1, c))); out = project(x) + dx.
# ---------------------------------------------------------------------------
def _out_body(x_ref, c_ref, net1_ref, nstat_ref, w_gr_ref, b_gr_ref,
              rw_ref, rb_ref, pw_ref, o_ref, *, h_pad, x_dim, o_pad):
    f32, bf16 = jnp.float32, jnp.bfloat16

    net1 = net1_ref[...].astype(f32)
    gb = (jnp.dot(c_ref[...].astype(bf16), w_gr_ref[...],
                  preferred_element_type=f32) + b_gr_ref[...])
    gamma = gb[:, :h_pad]
    beta = gb[:, h_pad:]

    n_hat = (net1 - nstat_ref[0:1, :]) * nstat_ref[1:2, :]
    h1 = jnp.maximum(gamma * n_hat + beta, 0.0)                      # ReLU

    dx = (jnp.dot(h1.astype(bf16), rw_ref[...],
                  preferred_element_type=f32) + rb_ref[...])

    if pw_ref is None:
        # project = nn.Identity(): skip the matmul entirely, just lane-pad x.
        x_s = x_ref[...].astype(f32)
        if o_pad > x_dim:
            x_s = jnp.concatenate(
                [x_s, jnp.zeros((x_s.shape[0], o_pad - x_dim), f32)], axis=1)
    else:
        x_s = jnp.dot(x_ref[...].astype(bf16), pw_ref[...],
                      preferred_element_type=f32)

    o_ref[...] = (x_s + dx).astype(o_ref.dtype)


def _make_out_kernel(identity_project, *, h_pad, x_dim, o_pad):
    if identity_project:
        def kernel(x_ref, c_ref, net1_ref, nstat_ref, w_gr_ref, b_gr_ref,
                   rw_ref, rb_ref, o_ref):
            _out_body(x_ref, c_ref, net1_ref, nstat_ref, w_gr_ref, b_gr_ref,
                      rw_ref, rb_ref, None, o_ref,
                      h_pad=h_pad, x_dim=x_dim, o_pad=o_pad)
    else:
        def kernel(x_ref, c_ref, net1_ref, nstat_ref, w_gr_ref, b_gr_ref,
                   rw_ref, rb_ref, pw_ref, o_ref):
            _out_body(x_ref, c_ref, net1_ref, nstat_ref, w_gr_ref, b_gr_ref,
                      rw_ref, rb_ref, pw_ref, o_ref,
                      h_pad=h_pad, x_dim=x_dim, o_pad=o_pad)
    return kernel


def _finalize_stats(sums, m):
    # mean / rsqrt(biased var + eps) from one-pass sum & sum-of-squares.
    # NOTE: E[x^2]-E[x]^2 can cancel for large-mean features; activations here
    # are normalized-scale, and var is clamped at 0 for safety.
    mean = sums[0:1, :] / m
    var = jnp.maximum(sums[1:2, :] / m - mean * mean, 0.0)
    rstd = jax.lax.rsqrt(var + EPS)
    return jnp.concatenate([mean, rstd], axis=0)


def _full_spec(a):
    nd = a.ndim
    return pl.BlockSpec(a.shape, lambda i: (0,) * nd)


@functools.partial(jax.jit, static_argnames=("o_dim",))
def conditional_resnet_block(x, c, params, *, o_dim):
    """x: (..., x_dim), c: (..., c_dim) with identical leading dims."""
    x_dim = x.shape[-1]
    c_dim = c.shape[-1]
    batch_shape = x.shape[:-1]
    assert c.shape[:-1] == batch_shape

    x2 = x.reshape(-1, x_dim)            # keep HBM dtype; cast inside kernels
    c2 = c.reshape(-1, c_dim)
    m = x2.shape[0]

    x_pad = params["w_gb"].shape[-1] // 2
    h_pad = params["base_w"].shape[-1]
    o_pad = params["res_w"].shape[-1]
    identity = "proj_w" not in params

    tile_m = _pick_tile_m(m)
    m_pad = _round_up(m, tile_m)
    if m_pad != m:
        x2 = jnp.pad(x2, ((0, m_pad - m), (0, 0)))
        c2 = jnp.pad(c2, ((0, m_pad - m), (0, 0)))
    grid = (m_pad // tile_m,)

    vmem = _vmem_limit_bytes()
    cp_arb = pltpu.CompilerParams(dimension_semantics=("arbitrary",),
                                  vmem_limit_bytes=vmem)
    cp_par = pltpu.CompilerParams(dimension_semantics=("parallel",),
                                  vmem_limit_bytes=vmem)

    def row_spec(d):
        return pl.BlockSpec((tile_m, d), lambda i: (i, 0))

    # ---- pass 1: batch statistics of x ------------------------------------
    xsums = pl.pallas_call(
        _colstats_kernel,
        grid=grid,
        in_specs=[row_spec(x_dim)],
        out_specs=pl.BlockSpec((2, x_dim), lambda i: (0, 0)),
        out_shape=jax.ShapeDtypeStruct((2, x_dim), jnp.float32),
        compiler_params=cp_arb,
    )(x2)
    xstat = _finalize_stats(xsums, m)

    # ---- pass 2: net1 = base(relu(norm_base(x, c))) + its batch stats ------
    mid_kernel = functools.partial(_mid_kernel, x_dim=x_dim, x_pad=x_pad,
                                   tile_m=tile_m, true_m=m)
    net1, nsums = pl.pallas_call(
        mid_kernel,
        grid=grid,
        in_specs=[row_spec(x_dim), row_spec(c_dim),
                  _full_spec(xstat), _full_spec(params["w_gb"]),
                  _full_spec(params["b_gb"]), _full_spec(params["base_w"]),
                  _full_spec(params["base_b"])],
        out_specs=[pl.BlockSpec((tile_m, h_pad), lambda i: (i, 0)),
                   pl.BlockSpec((2, h_pad), lambda i: (0, 0))],
        out_shape=[jax.ShapeDtypeStruct((m_pad, h_pad), jnp.bfloat16),
                   jax.ShapeDtypeStruct((2, h_pad), jnp.float32)],
        compiler_params=cp_arb,
    )(x2, c2, xstat, params["w_gb"], params["b_gb"],
      params["base_w"], params["base_b"])
    nstat = _finalize_stats(nsums, m)

    # ---- pass 3: out = project(x) + residual(relu(norm_residual(net1, c))) -
    out_kernel = _make_out_kernel(identity, h_pad=h_pad, x_dim=x_dim,
                                  o_pad=o_pad)
    args = [x2, c2, net1, nstat, params["w_gr"], params["b_gr"],
            params["res_w"], params["res_b"]]
    in_specs = [row_spec(x_dim), row_spec(c_dim),
                pl.BlockSpec((tile_m, h_pad), lambda i: (i, 0)),
                _full_spec(nstat), _full_spec(params["w_gr"]),
                _full_spec(params["b_gr"]), _full_spec(params["res_w"]),
                _full_spec(params["res_b"])]
    if not identity:
        args.append(params["proj_w"])
        in_specs.append(_full_spec(params["proj_w"]))

    out = pl.pallas_call(
        out_kernel,
        grid=grid,
        in_specs=in_specs,
        out_specs=pl.BlockSpec((tile_m, o_pad), lambda i: (i, 0)),
        out_shape=jax.ShapeDtypeStruct((m_pad, o_pad), jnp.float32),
        compiler_params=cp_par,
    )(*args)

    return out[:m, :o_dim].reshape(*batch_shape, o_dim)


# ---------------------------------------------------------------------------
# Parameters
# ---------------------------------------------------------------------------
def init_raw_params(key, x_dim, c_dim, h_dim, o_dim):
    """Deterministic synthetic parameters. PyTorch Linear weights are stored
    pre-transposed to (in_features, out_features) so kernels do x @ W + b.

    NOTE: the real module zero-inits the residual Linear and constant-inits
    the conditional gamma/beta Linears (a fresh forward collapses to
    project(x)); deterministic random values are used here so every compute
    path is exercised non-trivially."""
    ks = jax.random.split(key, 13)
    s = 0.1
    p = {
        "gb_w": s * jax.random.normal(ks[0], (c_dim, x_dim), jnp.float32),
        "gb_b": 1.0 + s * jax.random.normal(ks[1], (1, x_dim), jnp.float32),
        "bb_w": s * jax.random.normal(ks[2], (c_dim, x_dim), jnp.float32),
        "bb_b": s * jax.random.normal(ks[3], (1, x_dim), jnp.float32),
        "gr_w": s * jax.random.normal(ks[4], (c_dim, h_dim), jnp.float32),
        "gr_b": 1.0 + s * jax.random.normal(ks[5], (1, h_dim), jnp.float32),
        "br_w": s * jax.random.normal(ks[6], (c_dim, h_dim), jnp.float32),
        "br_b": s * jax.random.normal(ks[7], (1, h_dim), jnp.float32),
        "base_w": s * jax.random.normal(ks[8], (x_dim, h_dim), jnp.float32),
        "base_b": s * jax.random.normal(ks[9], (1, h_dim), jnp.float32),
        "res_w": s * jax.random.normal(ks[10], (h_dim, o_dim), jnp.float32),
        "res_b": s * jax.random.normal(ks[11], (1, o_dim), jnp.float32),
    }
    if x_dim != o_dim:
        p["proj_w"] = s * jax.random.normal(ks[12], (x_dim, o_dim), jnp.float32)
    return p


def pack_params(raw, x_dim, c_dim, h_dim, o_dim):
    """Pad feature axes to 128-lane multiples, fuse gamma/beta projections
    (gamma at lane 0, beta at the next 128-lane tile) and cast MXU weights to
    bf16 (biases stay f32, added after the f32 accumulate)."""
    x_pad = _round_up(x_dim, LANE)
    h_pad = _round_up(h_dim, LANE)
    o_pad = _round_up(o_dim, LANE)
    f32, bf16 = jnp.float32, jnp.bfloat16

    def pad2(a, rows, cols):
        return jnp.pad(a, ((0, rows - a.shape[0]), (0, cols - a.shape[1])))

    w_gb = jnp.zeros((c_dim, 2 * x_pad), f32)
    w_gb = w_gb.at[:, :x_dim].set(raw["gb_w"])
    w_gb = w_gb.at[:, x_pad:x_pad + x_dim].set(raw["bb_w"])
    b_gb = jnp.zeros((1, 2 * x_pad), f32)
    b_gb = b_gb.at[:, :x_dim].set(raw["gb_b"])
    b_gb = b_gb.at[:, x_pad:x_pad + x_dim].set(raw["bb_b"])

    w_gr = jnp.zeros((c_dim, 2 * h_pad), f32)
    w_gr = w_gr.at[:, :h_dim].set(raw["gr_w"])
    w_gr = w_gr.at[:, h_pad:h_pad + h_dim].set(raw["br_w"])
    b_gr = jnp.zeros((1, 2 * h_pad), f32)
    b_gr = b_gr.at[:, :h_dim].set(raw["gr_b"])
    b_gr = b_gr.at[:, h_pad:h_pad + h_dim].set(raw["br_b"])

    packed = {
        "w_gb": w_gb.astype(bf16), "b_gb": b_gb,
        "w_gr": w_gr.astype(bf16), "b_gr": b_gr,
        "base_w": pad2(raw["base_w"], x_dim, h_pad).astype(bf16),
        "base_b": pad2(raw["base_b"], 1, h_pad),
        "res_w": pad2(raw["res_w"], h_pad, o_pad).astype(bf16),
        "res_b": pad2(raw["res_b"], 1, o_pad),
    }
    if "proj_w" in raw:
        packed["proj_w"] = pad2(raw["proj_w"], x_dim, o_pad).astype(bf16)
    return packed


# ---------------------------------------------------------------------------
# Pure-JAX f32 reference mirroring the PyTorch forward (train-mode BN)
# ---------------------------------------------------------------------------
def _bn_train(v):
    mean = jnp.mean(v, axis=0, keepdims=True)
    var = jnp.mean((v - mean) ** 2, axis=0, keepdims=True)   # biased variance
    return (v - mean) * jax.lax.rsqrt(var + EPS)


def reference(x, c, raw):
    batch_shape = x.shape[:-1]
    x2 = x.reshape(-1, x.shape[-1]).astype(jnp.float32)
    c2 = c.reshape(-1, c.shape[-1]).astype(jnp.float32)

    def cbn(v, gw, gb, bw, bb):
        return (c2 @ gw + gb) * _bn_train(v) + (c2 @ bw + bb)

    h = jax.nn.relu(cbn(x2, raw["gb_w"], raw["gb_b"], raw["bb_w"], raw["bb_b"]))
    net1 = h @ raw["base_w"] + raw["base_b"]
    h1 = jax.nn.relu(cbn(net1, raw["gr_w"], raw["gr_b"], raw["br_w"], raw["br_b"]))
    dx = h1 @ raw["res_w"] + raw["res_b"]
    x_s = x2 @ raw["proj_w"] if "proj_w" in raw else x2
    out = x_s + dx
    return out.reshape(*batch_shape, out.shape[-1])


if __name__ == "__main__":
    key = jax.random.PRNGKey(0)
    k_x, k_c, k_p, k_x2, k_c2, k_p2 = jax.random.split(key, 6)

    # bf16 MXU operands (f32 accumulate) introduce ~1e-2-level drift vs the
    # pure-f32 reference; tolerance reflects that documented precision change.
    RTOL = ATOL = 3e-2

    # Case 1: x_dim != o_dim -> project is a Linear (skip-projection matmul).
    B, N = 2, 8
    x_dim, c_dim, h_dim, o_dim = 32, 16, 48, 64
    x = jax.random.normal(k_x, (B, N, x_dim), jnp.float32)
    c = jax.random.normal(k_c, (B, N, c_dim), jnp.float32)
    raw = init_raw_params(k_p, x_dim, c_dim, h_dim, o_dim)
    packed = pack_params(raw, x_dim, c_dim, h_dim, o_dim)

    out = conditional_resnet_block(x, c, packed, o_dim=o_dim)
    out = jax.block_until_ready(out)
    ref = reference(x, c, raw)
    assert out.shape == (B, N, o_dim), out.shape
    assert bool(jnp.allclose(out, ref, rtol=RTOL, atol=ATOL)), \
        "mismatch vs reference (linear projection case)"

    # Case 2: x_dim == o_dim -> project is nn.Identity (no skip matmul).
    x_dim2, c_dim2, h_dim2, o_dim2 = 32, 16, 32, 32
    x_b = jax.random.normal(k_x2, (B, N, x_dim2), jnp.float32)
    c_b = jax.random.normal(k_c2, (B, N, c_dim2), jnp.float32)
    raw_b = init_raw_params(k_p2, x_dim2, c_dim2, h_dim2, o_dim2)
    packed_b = pack_params(raw_b, x_dim2, c_dim2, h_dim2, o_dim2)

    out_b = conditional_resnet_block(x_b, c_b, packed_b, o_dim=o_dim2)
    out_b = jax.block_until_ready(out_b)
    ref_b = reference(x_b, c_b, raw_b)
    assert out_b.shape == (B, N, o_dim2), out_b.shape
    assert bool(jnp.allclose(out_b, ref_b, rtol=RTOL, atol=ATOL)), \
        "mismatch vs reference (identity projection case)"

    print("KERNEL_OK")
</pallas_src>

<mosaic_0001>
module attributes {stable_mosaic.version = 11 : i64} {
  func.func @_colstats_kernel(%arg0: i32, %arg1: memref<16x32xf32, #tpu.memory_space<vmem>>, %arg2: memref<2x32xf32, #tpu.memory_space<vmem>>) attributes {dimension_semantics = [#tpu.dimension_semantics<arbitrary>], iteration_bounds = array<i64: 1>, scalar_prefetch = 0 : i64, scratch_operands = 0 : i64, tpu.core_type = #tpu.core_type<tc>, window_params = [{transform_indices = @transform_0, window_bounds = array<i64: 16, 32>}, {pipeline_mode = #tpu.pipeline_mode<synchronous>, transform_indices = @transform_1, window_bounds = array<i64: 2, 32>}]} {
    %c0 = arith.constant 0 : index
    %c0_0 = arith.constant 0 : index
    %0 = vector.load %arg1[%c0, %c0_0] : memref<16x32xf32, #tpu.memory_space<vmem>>, vector<16x32xf32>
    %cst = arith.constant dense<0.000000e+00> : vector<32xf32>
    %1 = vector.multi_reduction <add>, %0, %cst [0] : vector<16x32xf32> to vector<32xf32>
    %2 = vector.shape_cast %1 : vector<32xf32> to vector<1x32xf32>
    %3 = arith.mulf %0, %0 : vector<16x32xf32>
    %cst_1 = arith.constant dense<0.000000e+00> : vector<32xf32>
    %4 = vector.multi_reduction <add>, %3, %cst_1 [0] : vector<16x32xf32> to vector<32xf32>
    %5 = vector.shape_cast %4 : vector<32xf32> to vector<1x32xf32>
    %6 = tpu.concatenate %2, %5 in 0 : vector<1x32xf32>, vector<1x32xf32> -> vector<2x32xf32>
    %c0_i32 = arith.constant 0 : i32
    %7 = arith.cmpi eq, %arg0, %c0_i32 : i32
    %8 = arith.extui %7 : i1 to i32
    %c0_i32_2 = arith.constant 0 : i32
    %9 = arith.cmpi ne, %8, %c0_i32_2 : i32
    scf.if %9 {
      %cst_7 = arith.constant 0.000000e+00 : f32
      %13 = vector.broadcast %cst_7 : f32 to vector<2x32xf32>
      %c0_8 = arith.constant 0 : index
      %c0_9 = arith.constant 0 : index
      %14 = vector.load %arg2[%c0_8, %c0_9] : memref<2x32xf32, #tpu.memory_space<vmem>>, vector<2x32xf32>
      tpu.vector_store %arg2[%c0_8, %c0_9], %13 {strides = array<i32>} : memref<2x32xf32, #tpu.memory_space<vmem>>, vector<2x32xf32>,
    } else {
    }
    %c0_3 = arith.constant 0 : index
    %c0_4 = arith.constant 0 : index
    %10 = vector.load %arg2[%c0_3, %c0_4] : memref<2x32xf32, #tpu.memory_space<vmem>>, vector<2x32xf32>
    %11 = arith.addf %10, %6 : vector<2x32xf32>
    %c0_5 = arith.constant 0 : index
    %c0_6 = arith.constant 0 : index
    %12 = vector.load %arg2[%c0_5, %c0_6] : memref<2x32xf32, #tpu.memory_space<vmem>>, vector<2x32xf32>
    tpu.vector_store %arg2[%c0_5, %c0_6], %11 {strides = array<i32>} : memref<2x32xf32, #tpu.memory_space<vmem>>, vector<2x32xf32>,
    return
  }
  func.func @transform_0(%arg0: i32) -> (i32, i32) {
    %c0_i32 = arith.constant 0 : i32
    %c0_i32_0 = arith.constant 0 : i32
    return %arg0, %c0_i32 : i32, i32
  }
  func.func @transform_1(%arg0: i32) -> (i32, i32) {
    %c0_i32 = arith.constant 0 : i32
    %c0_i32_0 = arith.constant 0 : i32
    %c0_i32_1 = arith.constant 0 : i32
    return %c0_i32, %c0_i32_0 : i32, i32
  }
}

module attributes {stable_mosaic.version = 11 : i64} {
  func.func @_mid_kernel(%arg0: i32, %arg1: memref<16x32xf32, #tpu.memory_space<vmem>>, %arg2: memref<16x16xf32, #tpu.memory_space<vmem>>, %arg3: memref<2x32xf32, #tpu.memory_space<vmem>>, %arg4: memref<16x256xbf16, #tpu.memory_space<vmem>>, %arg5: memref<1x256xf32, #tpu.memory_space<vmem>>, %arg6: memref<32x128xbf16, #tpu.memory_space<vmem>>, %arg7: memref<1x128xf32, #tpu.memory_space<vmem>>, %arg8: memref<16x128xbf16, #tpu.memory_space<vmem>>, %arg9: memref<2x128xf32, #tpu.memory_space<vmem>>) attributes {dimension_semantics = [#tpu.dimension_semantics<arbitrary>], iteration_bounds = array<i64: 1>, scalar_prefetch = 0 : i64, scratch_operands = 0 : i64, tpu.core_type = #tpu.core_type<tc>, window_params = [{transform_indices = @transform_0, window_bounds = array<i64: 16, 32>}, {transform_indices = @transform_1, window_bounds = array<i64: 16, 16>}, {pipeline_mode = #tpu.pipeline_mode<synchronous>, transform_indices = @transform_2, window_bounds = array<i64: 2, 32>}, {pipeline_mode = #tpu.pipeline_mode<synchronous>, transform_indices = @transform_3, window_bounds = array<i64: 16, 256>}, {pipeline_mode = #tpu.pipeline_mode<synchronous>, transform_indices = @transform_4, window_bounds = array<i64: 1, 256>}, {pipeline_mode = #tpu.pipeline_mode<synchronous>, transform_indices = @transform_5, window_bounds = array<i64: 32, 128>}, {pipeline_mode = #tpu.pipeline_mode<synchronous>, transform_indices = @transform_6, window_bounds = array<i64: 1, 128>}, {transform_indices = @transform_7, window_bounds = array<i64: 16, 128>}, {pipeline_mode = #tpu.pipeline_mode<synchronous>, transform_indices = @transform_8, window_bounds = array<i64: 2, 128>}]} {
    %c0 = arith.constant 0 : index
    %c0_0 = arith.constant 0 : index
    %0 = vector.load %arg1[%c0, %c0_0] : memref<16x32xf32, #tpu.memory_space<vmem>>, vector<16x32xf32>
    %c0_1 = arith.constant 0 : index
    %c0_2 = arith.constant 0 : index
    %1 = vector.load %arg2[%c0_1, %c0_2] : memref<16x16xf32, #tpu.memory_space<vmem>>, vector<16x16xf32>
    %2 = arith.truncf %1 : vector<16x16xf32> to vector<16x16xbf16>
    %c0_3 = arith.constant 0 : index
    %c0_4 = arith.constant 0 : index
    %3 = vector.load %arg4[%c0_3, %c0_4] : memref<16x256xbf16, #tpu.memory_space<vmem>>, vector<16x256xbf16>
    %cst = arith.constant dense<0.000000e+00> : vector<16x256xf32>
    %4 = tpu.matmul %2, %3, %cst {dimension_numbers = #tpu.dot_dimension_numbers<[1], [0], [0], [1], [0, 0, 1, 1], [], []>} : vector<16x16xbf16>, vector<16x256xbf16>, vector<16x256xf32> -> vector<16x256xf32>
    %c0_5 = arith.constant 0 : index
    %c0_6 = arith.constant 0 : index
    %5 = vector.load %arg5[%c0_5, %c0_6] : memref<1x256xf32, #tpu.memory_space<vmem>>, vector<1x256xf32>
    %6 = vector.broadcast %5 : vector<1x256xf32> to vector<16x256xf32>
    %7 = arith.addf %4, %6 : vector<16x256xf32>
    %8 = vector.extract_strided_slice %7 {offsets = [0, 0], sizes = [16, 32], strides = [1, 1]} : vector<16x256xf32> to vector<16x32xf32>
    %9 = vector.extract_strided_slice %7 {offsets = [0, 128], sizes = [16, 32], strides = [1, 1]} : vector<16x256xf32> to vector<16x32xf32>
    %c0_7 = arith.constant 0 : index
    %c0_8 = arith.constant 0 : index
    %10 = vector.load %arg3[%c0_7, %c0_8] : memref<2x32xf32, #tpu.memory_space<vmem>>, vector<1x32xf32>
    %11 = vector.broadcast %10 : vector<1x32xf32> to vector<16x32xf32>
    %12 = arith.subf %0, %11 : vector<16x32xf32>
    %c1 = arith.constant 1 : index
    %c0_9 = arith.constant 0 : index
    %13 = vector.load %arg3[%c1, %c0_9] : memref<2x32xf32, #tpu.memory_space<vmem>>, vector<1x32xf32>
    %14 = vector.broadcast %13 : vector<1x32xf32> to vector<16x32xf32>
    %15 = arith.mulf %12, %14 : vector<16x32xf32>
    %16 = arith.mulf %8, %15 : vector<16x32xf32>
    %17 = arith.addf %16, %9 : vector<16x32xf32>
    %cst_10 = arith.constant 0.000000e+00 : f32
    %18 = vector.broadcast %cst_10 : f32 to vector<16x32xf32>
    %19 = arith.maximumf %17, %18 : vector<16x32xf32>
    %20 = arith.truncf %19 : vector<16x32xf32> to vector<16x32xbf16>
    %c0_11 = arith.constant 0 : index
    %c0_12 = arith.constant 0 : index
    %21 = vector.load %arg6[%c0_11, %c0_12] : memref<32x128xbf16, #tpu.memory_space<vmem>>, vector<32x128xbf16>
    %cst_13 = arith.constant dense<0.000000e+00> : vector<16x128xf32>
    %22 = tpu.matmul %20, %21, %cst_13 {dimension_numbers = #tpu.dot_dimension_numbers<[1], [0], [0], [1], [0, 0, 1, 1], [], []>} : vector<16x32xbf16>, vector<32x128xbf16>, vector<16x128xf32> -> vector<16x128xf32>
    %c0_14 = arith.constant 0 : index
    %c0_15 = arith.constant 0 : index
    %23 = vector.load %arg7[%c0_14, %c0_15] : memref<1x128xf32, #tpu.memory_space<vmem>>, vector<1x128xf32>
    %24 = vector.broadcast %23 : vector<1x128xf32> to vector<16x128xf32>
    %25 = arith.addf %22, %24 : vector<16x128xf32>
    %c16_i32 = arith.constant 16 : i32
    %26 = arith.muli %arg0, %c16_i32 : i32
    %27 = tpu.iota {dimensions = array<i32: 0>} : vector<16x1xi32>
    %28 = vector.broadcast %26 : i32 to vector<16x1xi32>
    %29 = arith.addi %28, %27 : vector<16x1xi32>
    %c16_i32_16 = arith.constant 16 : i32
    %30 = vector.broadcast %c16_i32_16 : i32 to vector<16x1xi32>
    %31 = arith.cmpi slt, %29, %30 : vector<16x1xi32>
    %cst_17 = arith.constant 0.000000e+00 : f32
    %32 = vector.shape_cast %31 : vector<16x1xi1> to vector<16x1xi1>
    %33 = vector.broadcast %32 : vector<16x1xi1> to vector<16x128xi1>
    %34 = vector.broadcast %cst_17 : f32 to vector<16x128xf32>
    %35 = arith.select %33, %25, %34 : vector<16x128xi1>, vector<16x128xf32>
    %36 = arith.truncf %35 : vector<16x128xf32> to vector<16x128xbf16>
    %c0_18 = arith.constant 0 : index
    %c0_19 = arith.constant 0 : index
    %37 = vector.load %arg8[%c0_18, %c0_19] : memref<16x128xbf16, #tpu.memory_space<vmem>>, vector<16x128xbf16>
    tpu.vector_store %arg8[%c0_18, %c0_19], %36 {strides = array<i32>} : memref<16x128xbf16, #tpu.memory_space<vmem>>, vector<16x128xbf16>,
    %cst_20 = arith.constant dense<0.000000e+00> : vector<128xf32>
    %38 = vector.multi_reduction <add>, %35, %cst_20 [0] : vector<16x128xf32> to vector<128xf32>
    %39 = vector.shape_cast %38 : vector<128xf32> to vector<1x128xf32>
    %40 = arith.mulf %35, %35 : vector<16x128xf32>
    %cst_21 = arith.constant dense<0.000000e+00> : vector<128xf32>
    %41 = vector.multi_reduction <add>, %40, %cst_21 [0] : vector<16x128xf32> to vector<128xf32>
    %42 = vector.shape_cast %41 : vector<128xf32> to vector<1x128xf32>
    %43 = tpu.concatenate %39, %42 in 0 : vector<1x128xf32>, vector<1x128xf32> -> vector<2x128xf32>
    %c0_i32 = arith.constant 0 : i32
    %44 = arith.cmpi eq, %arg0, %c0_i32 : i32
    %45 = arith.extui %44 : i1 to i32
    %c0_i32_22 = arith.constant 0 : i32
    %46 = arith.cmpi ne, %45, %c0_i32_22 : i32
    scf.if %46 {
      %cst_27 = arith.constant 0.000000e+00 : f32
      %50 = vector.broadcast %cst_27 : f32 to vector<2x128xf32>
      %c0_28 = arith.constant 0 : index
      %c0_29 = arith.constant 0 : index
      %51 = vector.load %arg9[%c0_28, %c0_29] : memref<2x128xf32, #tpu.memory_space<vmem>>, vector<2x128xf32>
      tpu.vector_store %arg9[%c0_28, %c0_29], %50 {strides = array<i32>} : memref<2x128xf32, #tpu.memory_space<vmem>>, vector<2x128xf32>,
    } else {
    }
    %c0_23 = arith.constant 0 : index
    %c0_24 = arith.constant 0 : index
    %47 = vector.load %arg9[%c0_23, %c0_24] : memref<2x128xf32, #tpu.memory_space<vmem>>, vector<2x128xf32>
    %48 = arith.addf %47, %43 : vector<2x128xf32>
    %c0_25 = arith.constant 0 : index
    %c0_26 = arith.constant 0 : index
    %49 = vector.load %arg9[%c0_25, %c0_26] : memref<2x128xf32, #tpu.memory_space<vmem>>, vector<2x128xf32>
    tpu.vector_store %arg9[%c0_25, %c0_26], %48 {strides = array<i32>} : memref<2x128xf32, #tpu.memory_space<vmem>>, vector<2x128xf32>,
    return
  }
  func.func @transform_0(%arg0: i32) -> (i32, i32) {
    %c0_i32 = arith.constant 0 : i32
    %c0_i32_0 = arith.constant 0 : i32
    return %arg0, %c0_i32 : i32, i32
  }
  func.func @transform_1(%arg0: i32) -> (i32, i32) {
    %c0_i32 = arith.constant 0 : i32
    %c0_i32_0 = arith.constant 0 : i32
    return %arg0, %c0_i32 : i32, i32
  }
  func.func @transform_2(%arg0: i32) -> (i32, i32) {
    %c0_i32 = arith.constant 0 : i32
    %c0_i32_0 = arith.constant 0 : i32
    %c0_i32_1 = arith.constant 0 : i32
    return %c0_i32, %c0_i32_0 : i32, i32
  }
  func.func @transform_3(%arg0: i32) -> (i32, i32) {
    %c0_i32 = arith.constant 0 : i32
    %c0_i32_0 = arith.constant 0 : i32
    %c0_i32_1 = arith.constant 0 : i32
    return %c0_i32, %c0_i32_0 : i32, i32
  }
  func.func @transform_4(%arg0: i32) -> (i32, i32) {
    %c0_i32 = arith.constant 0 : i32
    %c0_i32_0 = arith.constant 0 : i32
    %c0_i32_1 = arith.constant 0 : i32
    return %c0_i32, %c0_i32_0 : i32, i32
  }
  func.func @transform_5(%arg0: i32) -> (i32, i32) {
    %c0_i32 = arith.constant 0 : i32
    %c0_i32_0 = arith.constant 0 : i32
    %c0_i32_1 = arith.constant 0 : i32
    return %c0_i32, %c0_i32_0 : i32, i32
  }
  func.func @transform_6(%arg0: i32) -> (i32, i32) {
    %c0_i32 = arith.constant 0 : i32
    %c0_i32_0 = arith.constant 0 : i32
    %c0_i32_1 = arith.constant 0 : i32
    return %c0_i32, %c0_i32_0 : i32, i32
  }
  func.func @transform_7(%arg0: i32) -> (i32, i32) {
    %c0_i32 = arith.constant 0 : i32
    %c0_i32_0 = arith.constant 0 : i32
    return %arg0, %c0_i32 : i32, i32
  }
  func.func @transform_8(%arg0: i32) -> (i32, i32) {
    %c0_i32 = arith.constant 0 : i32
    %c0_i32_0 = arith.constant 0 : i32
    %c0_i32_1 = arith.constant 0 : i32
    return %c0_i32, %c0_i32_0 : i32, i32
  }
}

module attributes {stable_mosaic.version = 11 : i64} {
  func.func @kernel(%arg0: i32, %arg1: memref<16x32xf32, #tpu.memory_space<vmem>>, %arg2: memref<16x16xf32, #tpu.memory_space<vmem>>, %arg3: memref<16x128xbf16, #tpu.memory_space<vmem>>, %arg4: memref<2x128xf32, #tpu.memory_space<vmem>>, %arg5: memref<16x256xbf16, #tpu.memory_space<vmem>>, %arg6: memref<1x256xf32, #tpu.memory_space<vmem>>, %arg7: memref<128x128xbf16, #tpu.memory_space<vmem>>, %arg8: memref<1x128xf32, #tpu.memory_space<vmem>>, %arg9: memref<32x128xbf16, #tpu.memory_space<vmem>>, %arg10: memref<16x128xf32, #tpu.memory_space<vmem>>) attributes {dimension_semantics = [#tpu.dimension_semantics<parallel>], iteration_bounds = array<i64: 1>, scalar_prefetch = 0 : i64, scratch_operands = 0 : i64, tpu.core_type = #tpu.core_type<tc>, window_params = [{transform_indices = @transform_0, window_bounds = array<i64: 16, 32>}, {transform_indices = @transform_1, window_bounds = array<i64: 16, 16>}, {transform_indices = @transform_2, window_bounds = array<i64: 16, 128>}, {pipeline_mode = #tpu.pipeline_mode<synchronous>, transform_indices = @transform_3, window_bounds = array<i64: 2, 128>}, {pipeline_mode = #tpu.pipeline_mode<synchronous>, transform_indices = @transform_4, window_bounds = array<i64: 16, 256>}, {pipeline_mode = #tpu.pipeline_mode<synchronous>, transform_indices = @transform_5, window_bounds = array<i64: 1, 256>}, {pipeline_mode = #tpu.pipeline_mode<synchronous>, transform_indices = @transform_6, window_bounds = array<i64: 128, 128>}, {pipeline_mode = #tpu.pipeline_mode<synchronous>, transform_indices = @transform_7, window_bounds = array<i64: 1, 128>}, {pipeline_mode = #tpu.pipeline_mode<synchronous>, transform_indices = @transform_8, window_bounds = array<i64: 32, 128>}, {transform_indices = @transform_9, window_bounds = array<i64: 16, 128>}]} {
    %c0 = arith.constant 0 : index
    %c0_0 = arith.constant 0 : index
    %0 = vector.load %arg3[%c0, %c0_0] : memref<16x128xbf16, #tpu.memory_space<vmem>>, vector<16x128xbf16>
    %1 = arith.extf %0 : vector<16x128xbf16> to vector<16x128xf32>
    %c0_1 = arith.constant 0 : index
    %c0_2 = arith.constant 0 : index
    %2 = vector.load %arg2[%c0_1, %c0_2] : memref<16x16xf32, #tpu.memory_space<vmem>>, vector<16x16xf32>
    %3 = arith.truncf %2 : vector<16x16xf32> to vector<16x16xbf16>
    %c0_3 = arith.constant 0 : index
    %c0_4 = arith.constant 0 : index
    %4 = vector.load %arg5[%c0_3, %c0_4] : memref<16x256xbf16, #tpu.memory_space<vmem>>, vector<16x256xbf16>
    %cst = arith.constant dense<0.000000e+00> : vector<16x256xf32>
    %5 = tpu.matmul %3, %4, %cst {dimension_numbers = #tpu.dot_dimension_numbers<[1], [0], [0], [1], [0, 0, 1, 1], [], []>} : vector<16x16xbf16>, vector<16x256xbf16>, vector<16x256xf32> -> vector<16x256xf32>
    %c0_5 = arith.constant 0 : index
    %c0_6 = arith.constant 0 : index
    %6 = vector.load %arg6[%c0_5, %c0_6] : memref<1x256xf32, #tpu.memory_space<vmem>>, vector<1x256xf32>
    %7 = vector.broadcast %6 : vector<1x256xf32> to vector<16x256xf32>
    %8 = arith.addf %5, %7 : vector<16x256xf32>
    %9 = vector.extract_strided_slice %8 {offsets = [0, 0], sizes = [16, 128], strides = [1, 1]} : vector<16x256xf32> to vector<16x128xf32>
    %10 = vector.extract_strided_slice %8 {offsets = [0, 128], sizes = [16, 128], strides = [1, 1]} : vector<16x256xf32> to vector<16x128xf32>
    %c0_7 = arith.constant 0 : index
    %c0_8 = arith.constant 0 : index
    %11 = vector.load %arg4[%c0_7, %c0_8] : memref<2x128xf32, #tpu.memory_space<vmem>>, vector<1x128xf32>
    %12 = vector.broadcast %11 : vector<1x128xf32> to vector<16x128xf32>
    %13 = arith.subf %1, %12 : vector<16x128xf32>
    %c1 = arith.constant 1 : index
    %c0_9 = arith.constant 0 : index
    %14 = vector.load %arg4[%c1, %c0_9] : memref<2x128xf32, #tpu.memory_space<vmem>>, vector<1x128xf32>
    %15 = vector.broadcast %14 : vector<1x128xf32> to vector<16x128xf32>
    %16 = arith.mulf %13, %15 : vector<16x128xf32>
    %17 = arith.mulf %9, %16 : vector<16x128xf32>
    %18 = arith.addf %17, %10 : vector<16x128xf32>
    %cst_10 = arith.constant 0.000000e+00 : f32
    %19 = vector.broadcast %cst_10 : f32 to vector<16x128xf32>
    %20 = arith.maximumf %18, %19 : vector<16x128xf32>
    %21 = arith.truncf %20 : vector<16x128xf32> to vector<16x128xbf16>
    %c0_11 = arith.constant 0 : index
    %c0_12 = arith.constant 0 : index
    %22 = vector.load %arg7[%c0_11, %c0_12] : memref<128x128xbf16, #tpu.memory_space<vmem>>, vector<128x128xbf16>
    %cst_13 = arith.constant dense<0.000000e+00> : vector<16x128xf32>
    %23 = tpu.matmul %21, %22, %cst_13 {dimension_numbers = #tpu.dot_dimension_numbers<[1], [0], [0], [1], [0, 0, 1, 1], [], []>} : vector<16x128xbf16>, vector<128x128xbf16>, vector<16x128xf32> -> vector<16x128xf32>
    %c0_14 = arith.constant 0 : index
    %c0_15 = arith.constant 0 : index
    %24 = vector.load %arg8[%c0_14, %c0_15] : memref<1x128xf32, #tpu.memory_space<vmem>>, vector<1x128xf32>
    %25 = vector.broadcast %24 : vector<1x128xf32> to vector<16x128xf32>
    %26 = arith.addf %23, %25 : vector<16x128xf32>
    %c0_16 = arith.constant 0 : index
    %c0_17 = arith.constant 0 : index
    %27 = vector.load %arg1[%c0_16, %c0_17] : memref<16x32xf32, #tpu.memory_space<vmem>>, vector<16x32xf32>
    %28 = arith.truncf %27 : vector<16x32xf32> to vector<16x32xbf16>
    %c0_18 = arith.constant 0 : index
    %c0_19 = arith.constant 0 : index
    %29 = vector.load %arg9[%c0_18, %c0_19] : memref<32x128xbf16, #tpu.memory_space<vmem>>, vector<32x128xbf16>
    %cst_20 = arith.constant dense<0.000000e+00> : vector<16x128xf32>
    %30 = tpu.matmul %28, %29, %cst_20 {dimension_numbers = #tpu.dot_dimension_numbers<[1], [0], [0], [1], [0, 0, 1, 1], [], []>} : vector<16x32xbf16>, vector<32x128xbf16>, vector<16x128xf32> -> vector<16x128xf32>
    %31 = arith.addf %30, %26 : vector<16x128xf32>
    %c0_21 = arith.constant 0 : index
    %c0_22 = arith.constant 0 : index
    %32 = vector.load %arg10[%c0_21, %c0_22] : memref<16x128xf32, #tpu.memory_space<vmem>>, vector<16x128xf32>
    tpu.vector_store %arg10[%c0_21, %c0_22], %31 {strides = array<i32>} : memref<16x128xf32, #tpu.memory_space<vmem>>, vector<16x128xf32>,
    return
  }
  func.func @transform_0(%arg0: i32) -> (i32, i32) {
    %c0_i32 = arith.constant 0 : i32
    %c0_i32_0 = arith.constant 0 : i32
    return %arg0, %c0_i32 : i32, i32
  }
  func.func @transform_1(%arg0: i32) -> (i32, i32) {
    %c0_i32 = arith.constant 0 : i32
    %c0_i32_0 = arith.constant 0 : i32
    return %arg0, %c0_i32 : i32, i32
  }
  func.func @transform_2(%arg0: i32) -> (i32, i32) {
    %c0_i32 = arith.constant 0 : i32
    %c0_i32_0 = arith.constant 0 : i32
    return %arg0, %c0_i32 : i32, i32
  }
  func.func @transform_3(%arg0: i32) -> (i32, i32) {
    %c0_i32 = arith.constant 0 : i32
    %c0_i32_0 = arith.constant 0 : i32
    %c0_i32_1 = arith.constant 0 : i32
    return %c0_i32, %c0_i32_0 : i32, i32
  }
  func.func @transform_4(%arg0: i32) -> (i32, i32) {
    %c0_i32 = arith.constant 0 : i32
    %c0_i32_0 = arith.constant 0 : i32
    %c0_i32_1 = arith.constant 0 : i32
    return %c0_i32, %c0_i32_0 : i32, i32
  }
  func.func @transform_5(%arg0: i32) -> (i32, i32) {
    %c0_i32 = arith.constant 0 : i32
    %c0_i32_0 = arith.constant 0 : i32
    %c0_i32_1 = arith.constant 0 : i32
    return %c0_i32, %c0_i32_0 : i32, i32
  }
  func.func @transform_6(%arg0: i32) -> (i32, i32) {
    %c0_i32 = arith.constant 0 : i32
    %c0_i32_0 = arith.constant 0 : i32
    %c0_i32_1 = arith.constant 0 : i32
    return %c0_i32, %c0_i32_0 : i32, i32
  }
  func.func @transform_7(%arg0: i32) -> (i32, i32) {
    %c0_i32 = arith.constant 0 : i32
    %c0_i32_0 = arith.constant 0 : i32
    %c0_i32_1 = arith.constant 0 : i32
    return %c0_i32, %c0_i32_0 : i32, i32
  }
  func.func @transform_8(%arg0: i32) -> (i32, i32) {
    %c0_i32 = arith.constant 0 : i32
    %c0_i32_0 = arith.constant 0 : i32
    %c0_i32_1 = arith.constant 0 : i32
    return %c0_i32, %c0_i32_0 : i32, i32
  }
  func.func @transform_9(%arg0: i32) -> (i32, i32) {
    %c0_i32 = arith.constant 0 : i32
    %c0_i32_0 = arith.constant 0 : i32
    return %arg0, %c0_i32 : i32, i32
  }
}

</mosaic_0001>

<llo_original>
// kernel: conditional_resnet_block.3
$region0: #{conditional_resnet_block.3}
  #allocation0 [shape = 'u32[]', space=smem, size = 0x4, offset = 0x4, fixed_abs, tag = 'smem constant byte address 0x4 - core index']
  #allocation1 [shape = 'u32[72,128]{1,0:T(1,128)}', space=vmem, size = 0x9000, scoped, tag = 'internal scratch']
  %s0 = inlined_call_operand.hbm [shape: f32[16,32], index: 0, kind: input, shape index: {}]
  %s1 = inlined_call_operand.vmem [shape: f32[2,32], index: 1, kind: output, shape index: {}]
  %s2 = sld [smem:[#allocation0]]
  $region22: #{conditional_resnet_block.3} parent=0
    _
  %s4 = ssub.s32 1, %s2
  %s5 = scalar_select 0, %s4, %s2
  $region1: #{conditional_resnet_block.3} parent=0
    #allocation2 [shape = 'u8[8192]{0}', space=vmem, size = 0x2000, scoped, tag = 'input window, operand 0, single buffered']
    #allocation3 [shape = 's32[1]{0}', space=sflag, size = 0x4, scoped, tag = 'scoped memory for conditional_resnet_block.3']
    %6 = vsyncpa [#allocation3], 0
    // Predicated region
    $region2: #{conditional_resnet_block.3} parent=1 // pred_check
      _
    $region3: #{conditional_resnet_block.3} parent=1 // pred_check_branch
      %8 = sbr.rel (0) target = $region5
    $region4: #{conditional_resnet_block.3} parent=1 // pred_region
      %10 = vsyncadd [#allocation3], 0
      %s11 = sshll.u32 %s0, 4
      %s12 = int_to_ptr.hbm [resolvable:$true] %s11
      %s13 = sshll.u32 [#allocation2], 4
      %s14 = int_to_ptr.vmem [resolvable:$true] %s13
      %19 = dma.hbm_to_vmem [thread:$0]  %s12, 256, %s14, [#allocation3], 128, 128, 8
    $region5: #{conditional_resnet_block.3} parent=1 // pred_fallthru
      _
    // Predicated region
    $region6: #{conditional_resnet_block.3} parent=1 // pred_check
      _
    $region7: #{conditional_resnet_block.3} parent=1 // pred_check_branch
      %21 = sbr.rel (0) target = $region9
    $region8: #{conditional_resnet_block.3} parent=1 // pred_region
      %23 = dma.done [#allocation3], 256
    $region9: #{conditional_resnet_block.3} parent=1 // pred_fallthru
      _
    %v24 = vld [vmem:[#allocation2] sm:$0xff]
    %v25 = vld [vmem:[#allocation2 + $0x8] sm:$0xff]
    %vm26 = vcmask 261120
    %v27 = vsel %vm26, %v24, 0.0
    %v28 = vsel %vm26, %v25, 0.0
    %v29 = vadd.f32 %v27, %v28
    %v30 = vrot.slane %v29, 4
    %v31 = vadd.f32 %v29, %v30
    %v32 = vrot.slane %v31, 2
    %v33 = vadd.f32 %v31, %v32
    %v34 = vrot.slane %v33, 1
    %v35 = vadd.f32 %v33, %v34
    %v36 = vmul.f32 %v24, %v24
    %v37 = vmul.f32 %v25, %v25
    %v38 = vsel %vm26, %v36, 0.0
    %v39 = vsel %vm26, %v37, 0.0
    %v40 = vadd.f32 %v38, %v39
    %v41 = vrot.slane %v40, 4
    %v42 = vadd.f32 %v40, %v41
    %v43 = vrot.slane %v42, 2
    %v44 = vadd.f32 %v42, %v43
    %v45 = vrot.slane %v44, 1
    %v46 = vadd.f32 %v44, %v45
    %vm47 = vcmask 1040384
    %v48 = vsel %vm47, %v35, %v46
    %p49 = scmp.eq.s32.totalorder 0, 0
    // Predicated region
    $region10: #{conditional_resnet_block.3} parent=1 // pred_check
      %p50 = pneg %p49
    $region11: #{conditional_resnet_block.3} parent=1 // pred_check_branch
      %52 = sbr.rel (%p50) target = $region13
    $region12: #{conditional_resnet_block.3} parent=1 // pred_region
      %vm53 = vcmask 254976
      %54 = vst.msk [vmem:[%s1] sm:$0x3] %vm53, 0.0
    $region13: #{conditional_resnet_block.3} parent=1 // pred_fallthru
      _
    %v55 = vld [vmem:[%s1] sm:$0x3]
    %v56 = vadd.f32 %v55, %v48
    %vm57 = vcmask 254976
    %58 = vst.msk [vmem:[%s1] sm:$0x3] %vm57, %v56
    // Predicated region
    $region14: #{conditional_resnet_block.3} parent=1 // pred_check
      _
    $region15: #{conditional_resnet_block.3} parent=1 // pred_check_branch
      %60 = sbr.rel (0) target = $region17
    $region16: #{conditional_resnet_block.3} parent=1 // pred_region
      _
    $region17: #{conditional_resnet_block.3} parent=1 // pred_fallthru
      _
    // Predicated region
    $region18: #{conditional_resnet_block.3} parent=1 // pred_check
      _
    $region19: #{conditional_resnet_block.3} parent=1 // pred_check_branch
      %62 = sbr.rel (0) target = $region21
    $region20: #{conditional_resnet_block.3} parent=1 // pred_region
      _
    $region21: #{conditional_resnet_block.3} parent=1 // pred_fallthru
      _
    %63 = vsyncpa [#allocation3], 1

// kernel: conditional_resnet_block.4
$region0: #{conditional_resnet_block.4}
  #allocation0 [shape = 'u32[]', space=smem, size = 0x4, offset = 0x4, fixed_abs, tag = 'smem constant byte address 0x4 - core index']
  #allocation1 [shape = 'u32[72,128]{1,0:T(1,128)}', space=vmem, size = 0x9000, scoped, tag = 'internal scratch']
  %s0 = inlined_call_operand.hbm [shape: f32[16,32], index: 0, kind: input, shape index: {}]
  %s1 = inlined_call_operand.hbm [shape: f32[16,16], index: 1, kind: input, shape index: {}]
  %s2 = inlined_call_operand.vmem [shape: f32[2,32], index: 2, kind: input, shape index: {}]
  %s3 = inlined_call_operand.vmem [shape: bf16[16,256], index: 3, kind: input, shape index: {}]
  %s4 = inlined_call_operand.vmem [shape: f32[1,256], index: 4, kind: input, shape index: {}]
  %s5 = inlined_call_operand.hbm [shape: bf16[32,128], index: 5, kind: input, shape index: {}]
  %s6 = inlined_call_operand.hbm [shape: f32[1,128], index: 6, kind: input, shape index: {}]
  %s7 = inlined_call_operand.vmem [shape: bf16[16,128], index: 7, kind: output, shape index: {0}]
  %s8 = inlined_call_operand.vmem [shape: f32[2,128], index: 8, kind: output, shape index: {1}]
  %9 = xla_tuple %s7, %s8
  %s10 = sld [smem:[#allocation0]]
  $region66: #{conditional_resnet_block.4} parent=0
    _
  %s12 = ssub.s32 1, %s10
  %s13 = scalar_select 0, %s12, %s10
  $region1: #{conditional_resnet_block.4} parent=0
    #allocation2 [shape = 'u8[8192]{0}', space=vmem, size = 0x2000, scoped, tag = 'input window, operand 0, single buffered']
    #allocation3 [shape = 's32[1]{0}', space=sflag, size = 0x4, scoped, tag = 'scoped memory for conditional_resnet_block.4']
    #allocation4 [shape = 'u8[8192]{0}', space=vmem, size = 0x2000, scoped, tag = 'input window, operand 1, single buffered']
    #allocation5 [shape = 's32[1]{0}', space=sflag, size = 0x4, scoped, tag = 'scoped memory for conditional_resnet_block.4']
    #allocation6 [shape = 'u8[8192]{0}', space=vmem, size = 0x2000, scoped, tag = 'input window, operand 5, single buffered']
    #allocation7 [shape = 'u8[512]{0}', space=vmem, size = 0x400, scoped, tag = 'input window, operand 6, single buffered']
    #allocation8 [shape = 's32[1]{0}', space=sflag, size = 0x4, scoped, tag = 'scoped memory for conditional_resnet_block.4']
    %14 = vsyncpa [#allocation3], 0
    %15 = vsyncpa [#allocation5], 0
    %16 = vsyncpa [#allocation8], 0
    // Predicated region
    $region2: #{conditional_resnet_block.4} parent=1 // pred_check
      _
    $region3: #{conditional_resnet_block.4} parent=1 // pred_check_branch
      %18 = sbr.rel (0) target = $region5
    $region4: #{conditional_resnet_block.4} parent=1 // pred_region
      %20 = vsyncadd [#allocation3], 0
      %s21 = sshll.u32 %s0, 4
      %s22 = int_to_ptr.hbm [resolvable:$true] %s21
      %s23 = sshll.u32 [#allocation2], 4
      %s24 = int_to_ptr.vmem [resolvable:$true] %s23
      %29 = dma.hbm_to_vmem [thread:$0]  %s22, 256, %s24, [#allocation3], 128, 128, 8
    $region5: #{conditional_resnet_block.4} parent=1 // pred_fallthru
      _
    // Predicated region
    $region6: #{conditional_resnet_block.4} parent=1 // pred_check
      _
    $region7: #{conditional_resnet_block.4} parent=1 // pred_check_branch
      %31 = sbr.rel (0) target = $region9
    $region8: #{conditional_resnet_block.4} parent=1 // pred_region
      %33 = vsyncadd [#allocation5], 0
      %s34 = sshll.u32 %s1, 4
      %s35 = int_to_ptr.hbm [resolvable:$true] %s34
      %s36 = sshll.u32 [#allocation4], 4
      %s37 = int_to_ptr.vmem [resolvable:$true] %s36
      %42 = dma.hbm_to_vmem [thread:$0]  %s35, 256, %s37, [#allocation5], 128, 128, 8
    $region9: #{conditional_resnet_block.4} parent=1 // pred_fallthru
      _
    // Predicated region
    $region10: #{conditional_resnet_block.4} parent=1 // pred_check
      _
    $region11: #{conditional_resnet_block.4} parent=1 // pred_check_branch
      %44 = sbr.rel (0) target = $region13
    $region12: #{conditional_resnet_block.4} parent=1 // pred_region
      _
    $region13: #{conditional_resnet_block.4} parent=1 // pred_fallthru
      _
    // Predicated region
    $region14: #{conditional_resnet_block.4} parent=1 // pred_check
      _
    $region15: #{conditional_resnet_block.4} parent=1 // pred_check_branch
      %46 = sbr.rel (0) target = $region17
    $region16: #{conditional_resnet_block.4} parent=1 // pred_region
      _
    $region17: #{conditional_resnet_block.4} parent=1 // pred_fallthru
      _
    // Predicated region
    $region18: #{conditional_resnet_block.4} parent=1 // pred_check
      _
    $region19: #{conditional_resnet_block.4} parent=1 // pred_check_branch
      %48 = sbr.rel (0) target = $region21
    $region20: #{conditional_resnet_block.4} parent=1 // pred_region
      _
    $region21: #{conditional_resnet_block.4} parent=1 // pred_fallthru
      _
    // Predicated region
    $region22: #{conditional_resnet_block.4} parent=1 // pred_check
      _
    $region23: #{conditional_resnet_block.4} parent=1 // pred_check_branch
      %50 = sbr.rel (0) target = $region25
    $region24: #{conditional_resnet_block.4} parent=1 // pred_region
      %52 = vsyncadd [#allocation5], 0
      %s53 = sshll.u32 %s5, 4
      %s54 = int_to_ptr.hbm [resolvable:$true] %s53
      %s55 = sshll.u32 [#allocation6], 4
      %s56 = int_to_ptr.vmem [resolvable:$true] %s55
      %61 = dma.hbm_to_vmem [thread:$0]  %s54, 256, %s56, [#allocation5], 64, 64, 4
    $region25: #{conditional_resnet_block.4} parent=1 // pred_fallthru
      _
    // Predicated region
    $region26: #{conditional_resnet_block.4} parent=1 // pred_check
      _
    $region27: #{conditional_resnet_block.4} parent=1 // pred_check_branch
      %63 = sbr.rel (0) target = $region29
    $region28: #{conditional_resnet_block.4} parent=1 // pred_region
      %65 = vsyncadd [#allocation8], 0
      %s67 = sshll.u32 %s6, 4
      %s68 = int_to_ptr.hbm [resolvable:$true] %s67
      %s69 = sshll.u32 [#allocation7], 4
      %s70 = int_to_ptr.vmem [resolvable:$true] %s69
      %72 = dma.hbm_to_vmem [thread:$0]  %s68, 16, %s70, [#allocation8]
    $region29: #{conditional_resnet_block.4} parent=1 // pred_fallthru
      _
    // Predicated region
    $region30: #{conditional_resnet_block.4} parent=1 // pred_check
      _
    $region31: #{conditional_resnet_block.4} parent=1 // pred_check_branch
      %74 = sbr.rel (0) target = $region33
    $region32: #{conditional_resnet_block.4} parent=1 // pred_region
      %76 = dma.done [#allocation3], 256
    $region33: #{conditional_resnet_block.4} parent=1 // pred_fallthru
      _
    // Predicated region
    $region34: #{conditional_resnet_block.4} parent=1 // pred_check
      _
    $region35: #{conditional_resnet_block.4} parent=1 // pred_check_branch
      %78 = sbr.rel (0) target = $region37
    $region36: #{conditional_resnet_block.4} parent=1 // pred_region
      %80 = dma.done [#allocation5], 256
    $region37: #{conditional_resnet_block.4} parent=1 // pred_fallthru
      _
    // Predicated region
    $region38: #{conditional_resnet_block.4} parent=1 // pred_check
      _
    $region39: #{conditional_resnet_block.4} parent=1 // pred_check_branch
      %82 = sbr.rel (0) target = $region41
    $region40: #{conditional_resnet_block.4} parent=1 // pred_region
      %84 = dma.done [#allocation5], 256
    $region41: #{conditional_resnet_block.4} parent=1 // pred_fallthru
      _
    // Predicated region
    $region42: #{conditional_resnet_block.4} parent=1 // pred_check
      _
    $region43: #{conditional_resnet_block.4} parent=1 // pred_check_branch
      %86 = sbr.rel (0) target = $region45
    $region44: #{conditional_resnet_block.4} parent=1 // pred_region
      %88 = dma.done [#allocation8], 16
    $region45: #{conditional_resnet_block.4} parent=1 // pred_fallthru
      _
    %v90 = vld [vmem:[#allocation2] sm:$0xff]
    %v91 = vld [vmem:[#allocation2 + $0x8] sm:$0xff]
    %v92 = vld [vmem:[#allocation4] sm:$0xff]
    %v93 = vld [vmem:[#allocation4 + $0x8] sm:$0xff]
    %v94 = vpack.c.bf16 %v93, %v92
    %v95 = vld [vmem:[%s3] sm:$0xff]
    %v96 = vld [vmem:[%s3 + $0x8] sm:$0xff]
    %v97 = vld [vmem:[%s4] sm:$0x3]
    %v99 = vperm.slane %v97, 0
    %v100 = vperm.slane %v97, 1
    %v105 = vunpack.c.l.b16 %v95
    %v106 = vunpack.c.h.b16 %v95
    %v107 = vunpack.c.l.b16 %v96
    %v108 = vunpack.c.h.b16 %v96
    %v109 = vpack.c.b16 %v107, %v105
    %v110 = vpack.c.b16 %v108, %v106
    %vm113 = vcmask 130048
    %v115 = vsel %vm113, %v94, 0
    %117 = vmatpush.bf16.msra.mxu0 0
    %118 = vmatpush.bf16.msra.mxu0 0
    %119 = vmatpush.bf16.msra.mxu0 0
    %120 = vmatpush.bf16.msra.mxu0 0
    %121 = vmatpush.bf16.msra.mxu0 0
    %122 = vmatpush.bf16.msra.mxu0 0
    %123 = vmatpush.bf16.msra.mxu0 0
    %124 = vmatpush.bf16.msra.mxu0 %v109
    %125 = vmatmul.bf16.gmra.mxu0 %v115
    %v126 = vpop.f32.mrf.mxu0
    %v127 = vadd.f32 %v99, %v126
    %v128 = vpop.f32.mrf.mxu0
    %v129 = vadd.f32 %v99, %v128
    %130 = vdwg.mxu0
    %131 = vmatpush.bf16.msra.mxu0 0
    %132 = vmatpush.bf16.msra.mxu0 0
    %133 = vmatpush.bf16.msra.mxu0 0
    %134 = vmatpush.bf16.msra.mxu0 0
    %135 = vmatpush.bf16.msra.mxu0 0
    %136 = vmatpush.bf16.msra.mxu0 0
    %137 = vmatpush.bf16.msra.mxu0 0
    %138 = vmatpush.bf16.msra.mxu0 %v110
    %139 = vmatmul.bf16.gmra.mxu0 %v115
    %v140 = vpop.f32.mrf.mxu0
    %v141 = vadd.f32 %v100, %v140
    %v142 = vpop.f32.mrf.mxu0
    %v143 = vadd.f32 %v100, %v142
    %144 = vdwg.mxu0
    %v145 = vld [vmem:[%s2] sm:$0x1]
    %v146 = vperm.slane %v145, 0
    %v147 = vsub.f32 %v90, %v146
    %v148 = vsub.f32 %v91, %v146
    %v149 = vld [vmem:[%s2 + $0x1] sm:$0x1]
    %v150 = vperm.slane %v149, 0
    %v151 = vmul.f32 %v147, %v150
    %v152 = vmul.f32 %v148, %v150
    %v153 = vmul.f32 %v127, %v151
    %v154 = vmul.f32 %v129, %v152
    %v155 = vadd.f32 %v153, %v141
    %v156 = vadd.f32 %v154, %v143
    %v157 = vmax.f32 %v155, 0.0
    %v158 = vmax.f32 %v156, 0.0
    %v159 = vpack.c.bf16 %v158, %v157
    %v160 = vld [vmem:[#allocation6] sm:$0xf]
    %v161 = vld [vmem:[#allocation6 + $0x4] sm:$0xf]
    %v162 = vld [vmem:[#allocation6 + $0x8] sm:$0xf]
    %v163 = vld [vmem:[#allocation6 + $0xc] sm:$0xf]
    %v164 = vld [vmem:[#allocation7] sm:$0x1]
    %v166 = vperm.slane %v164, 0
    %v172 = vunpack.c.l.b16 %v160
    %v173 = vunpack.c.l.b16 %v161
    %v174 = vunpack.c.l.b16 %v162
    %v175 = vunpack.c.l.b16 %v163
    %v176 = vpack.c.b16 %v173, %v172
    %v177 = vpack.c.b16 %v175, %v174
    %vm180 = vcmask 261120
    %v182 = vsel %vm180, %v159, 0
    %184 = vmatpush.bf16.msra.mxu0 0
    %185 = vmatpush.bf16.msra.mxu0 0
    %186 = vmatpush.bf16.msra.mxu0 0
    %187 = vmatpush.bf16.msra.mxu0 0
    %188 = vmatpush.bf16.msra.mxu0 0
    %189 = vmatpush.bf16.msra.mxu0 0
    %190 = vmatpush.bf16.msra.mxu0 %v177
    %191 = vmatpush.bf16.msra.mxu0 %v176
    %192 = vmatmul.bf16.gmra.mxu0 %v182
    %v193 = vpop.f32.mrf.mxu0
    %v194 = vadd.f32 %v166, %v193
    %v195 = vpop.f32.mrf.mxu0
    %v196 = vadd.f32 %v166, %v195
    %197 = vdwg.mxu0
    %s198 = smul.u32 0, 16
    %v199 = vlaneseq
    %v200 = vshrl.u32 %v199, 7
    %v201 = vadd.s32 %v200, 8
    %v202 = vstv %s198
    %v203 = vadd.s32 %v202, %v200
    %v204 = vadd.s32 %v202, %v201
    %vm205 = vcmp.lt.s32.totalorder %v203, 16
    %vm206 = vcmp.lt.s32.totalorder %v204, 16
    %v207 = vsel %vm205, 1, 0
    %v208 = vsel %vm206, 1, 0
    %vm209 = vcmp.eq.s32.totalorder %v207, 1
    %vm210 = vcmp.eq.s32.totalorder %v208, 1
    %v211 = vsel %vm209, %v194, 0.0
    %v212 = vsel %vm210, %v196, 0.0
    %v213 = vpack.c.bf16 %v211, %v211
    %v214 = vpack.c.bf16 %v212, %v212
    %215 = vst [vmem:[%s7] sm:$0xf] %v213
    %216 = vst [vmem:[%s7 + $0x4] sm:$0xf] %v214
    %v217 = vadd.f32 %v211, %v212
    %v218 = vrot.slane %v217, 4
    %v219 = vadd.f32 %v217, %v218
    %v220 = vrot.slane %v219, 2
    %v221 = vadd.f32 %v219, %v220
    %v222 = vrot.slane %v221, 1
    %v223 = vadd.f32 %v221, %v222
    %v224 = vmul.f32 %v211, %v211
    %v225 = vmul.f32 %v212, %v212
    %v226 = vadd.f32 %v224, %v225
    %v227 = vrot.slane %v226, 4
    %v228 = vadd.f32 %v226, %v227
    %v229 = vrot.slane %v228, 2
    %v230 = vadd.f32 %v228, %v229
    %v231 = vrot.slane %v230, 1
    %v232 = vadd.f32 %v230, %v231
    %vm233 = vcmask 1040384
    %v234 = vsel %vm233, %v223, %v232
    %p235 = scmp.eq.s32.totalorder 0, 0
    // Predicated region
    $region46: #{conditional_resnet_block.4} parent=1 // pred_check
      %p236 = pneg %p235
    $region47: #{conditional_resnet_block.4} parent=1 // pred_check_branch
      %238 = sbr.rel (%p236) target = $region49
    $region48: #{conditional_resnet_block.4} parent=1 // pred_region
      %239 = vst [vmem:[%s8] sm:$0x3] 0.0
    $region49: #{conditional_resnet_block.4} parent=1 // pred_fallthru
      _
    %v240 = vld [vmem:[%s8] sm:$0x3]
    %v241 = vadd.f32 %v240, %v234
    %242 = vst [vmem:[%s8] sm:$0x3] %v241
    // Predicated region
    $region50: #{conditional_resnet_block.4} parent=1 // pred_check
      _
    $region51: #{conditional_resnet_block.4} parent=1 // pred_check_branch
      %244 = sbr.rel (0) target = $region53
    $region52: #{conditional_resnet_block.4} parent=1 // pred_region
      _
    $region53: #{conditional_resnet_block.4} parent=1 // pred_fallthru
      _
    // Predicated region
    $region54: #{conditional_resnet_block.4} parent=1 // pred_check
      _
    $region55: #{conditional_resnet_block.4} parent=1 // pred_check_branch
      %246 = sbr.rel (0) target = $region57
    $region56: #{conditional_resnet_block.4} parent=1 // pred_region
      _
    $region57: #{conditional_resnet_block.4} parent=1 // pred_fallthru
      _
    // Predicated region
    $region58: #{conditional_resnet_block.4} parent=1 // pred_check
      _
    $region59: #{conditional_resnet_block.4} parent=1 // pred_check_branch
      %248 = sbr.rel (0) target = $region61
    $region60: #{conditional_resnet_block.4} parent=1 // pred_region
      _
    $region61: #{conditional_resnet_block.4} parent=1 // pred_fallthru
      _
    // Predicated region
    $region62: #{conditional_resnet_block.4} parent=1 // pred_check
      _
    $region63: #{conditional_resnet_block.4} parent=1 // pred_check_branch
      %250 = sbr.rel (0) target = $region65
    $region64: #{conditional_resnet_block.4} parent=1 // pred_region
      _
    $region65: #{conditional_resnet_block.4} parent=1 // pred_fallthru
      _
    %251 = vsyncpa [#allocation3], 1
    %252 = vsyncpa [#allocation5], 1
    %253 = vsyncpa [#allocation8], 1

// kernel: conditional_resnet_block.5
$region0: #{conditional_resnet_block.5}
  #allocation0 [shape = 'u32[]', space=smem, size = 0x4, offset = 0x4, fixed_abs, tag = 'smem constant byte address 0x4 - core index']
  #allocation1 [shape = 'u32[72,128]{1,0:T(1,128)}', space=vmem, size = 0x9000, scoped, tag = 'internal scratch']
  %s0 = inlined_call_operand.vmem [shape: f32[16,32], index: 0, kind: input, shape index: {}]
  %s1 = inlined_call_operand.hbm [shape: f32[16,16], index: 1, kind: input, shape index: {}]
  %s2 = inlined_call_operand.vmem [shape: bf16[16,128], index: 2, kind: input, shape index: {}]
  %s3 = inlined_call_operand.vmem [shape: f32[2,128], index: 3, kind: input, shape index: {}]
  %s4 = inlined_call_operand.hbm [shape: bf16[16,256], index: 4, kind: input, shape index: {}]
  %s5 = inlined_call_operand.hbm [shape: f32[1,256], index: 5, kind: input, shape index: {}]
  %s6 = inlined_call_operand.hbm [shape: bf16[128,128], index: 6, kind: input, shape index: {}]
  %s7 = inlined_call_operand.hbm [shape: f32[1,128], index: 7, kind: input, shape index: {}]
  %s8 = inlined_call_operand.hbm [shape: bf16[32,128], index: 8, kind: input, shape index: {}]
  %s9 = inlined_call_operand.vmem [shape: f32[16,128], index: 9, kind: output, shape index: {}]
  %s10 = sld [smem:[#allocation0]]
  $region70: #{conditional_resnet_block.5} parent=0
    _
  %s12 = ssub.s32 1, %s10
  %s13 = scalar_select 0, %s12, %s10
  $region1: #{conditional_resnet_block.5} parent=0
    #allocation2 [shape = 'u8[8192]{0}', space=vmem, size = 0x2000, scoped, tag = 'input window, operand 1, single buffered']
    #allocation3 [shape = 's32[1]{0}', space=sflag, size = 0x4, scoped, tag = 'scoped memory for conditional_resnet_block.5']
    #allocation4 [shape = 'u8[8192]{0}', space=vmem, size = 0x2000, scoped, tag = 'input window, operand 4, single buffered']
    #allocation5 [shape = 's32[1]{0}', space=sflag, size = 0x4, scoped, tag = 'scoped memory for conditional_resnet_block.5']
    #allocation6 [shape = 'u8[1024]{0}', space=vmem, size = 0x400, scoped, tag = 'input window, operand 5, single buffered']
    #allocation7 [shape = 'u8[32768]{0}', space=vmem, size = 0x8000, scoped, tag = 'input window, operand 6, single buffered']
    #allocation8 [shape = 's32[1]{0}', space=sflag, size = 0x4, scoped, tag = 'scoped memory for conditional_resnet_block.5']
    #allocation9 [shape = 'u8[512]{0}', space=vmem, size = 0x400, scoped, tag = 'input window, operand 7, single buffered']
    #allocation10 [shape = 'u8[8192]{0}', space=vmem, size = 0x2000, scoped, tag = 'input window, operand 8, single buffered']
    #allocation11 [shape = 's32[1]{0}', space=sflag, size = 0x4, scoped, tag = 'scoped memory for conditional_resnet_block.5']
    %14 = vsyncpa [#allocation3], 0
    %15 = vsyncpa [#allocation5], 0
    %16 = vsyncpa [#allocation8], 0
    %17 = vsyncpa [#allocation11], 0
    // Predicated region
    $region2: #{conditional_resnet_block.5} parent=1 // pred_check
      _
    $region3: #{conditional_resnet_block.5} parent=1 // pred_check_branch
      %19 = sbr.rel (0) target = $region5
    $region4: #{conditional_resnet_block.5} parent=1 // pred_region
      _
    $region5: #{conditional_resnet_block.5} parent=1 // pred_fallthru
      _
    // Predicated region
    $region6: #{conditional_resnet_block.5} parent=1 // pred_check
      _
    $region7: #{conditional_resnet_block.5} parent=1 // pred_check_branch
      %21 = sbr.rel (0) target = $region9
    $region8: #{conditional_resnet_block.5} parent=1 // pred_region
      %23 = vsyncadd [#allocation3], 0
      %s24 = sshll.u32 %s1, 4
      %s25 = int_to_ptr.hbm [resolvable:$true] %s24
      %s26 = sshll.u32 [#allocation2], 4
      %s27 = int_to_ptr.vmem [resolvable:$true] %s26
      %32 = dma.hbm_to_vmem [thread:$0]  %s25, 256, %s27, [#allocation3], 128, 128, 8
    $region9: #{conditional_resnet_block.5} parent=1 // pred_fallthru
      _
    // Predicated region
    $region10: #{conditional_resnet_block.5} parent=1 // pred_check
      _
    $region11: #{conditional_resnet_block.5} parent=1 // pred_check_branch
      %34 = sbr.rel (0) target = $region13
    $region12: #{conditional_resnet_block.5} parent=1 // pred_region
      _
    $region13: #{conditional_resnet_block.5} parent=1 // pred_fallthru
      _
    // Predicated region
    $region14: #{conditional_resnet_block.5} parent=1 // pred_check
      _
    $region15: #{conditional_resnet_block.5} parent=1 // pred_check_branch
      %36 = sbr.rel (0) target = $region17
    $region16: #{conditional_resnet_block.5} parent=1 // pred_region
      _
    $region17: #{conditional_resnet_block.5} parent=1 // pred_fallthru
      _
    // Predicated region
    $region18: #{conditional_resnet_block.5} parent=1 // pred_check
      _
    $region19: #{conditional_resnet_block.5} parent=1 // pred_check_branch
      %38 = sbr.rel (0) target = $region21
    $region20: #{conditional_resnet_block.5} parent=1 // pred_region
      %40 = vsyncadd [#allocation5], 0
      %s41 = sshll.u32 %s4, 4
      %s42 = int_to_ptr.hbm [resolvable:$true] %s41
      %s43 = sshll.u32 [#allocation4], 4
      %s44 = int_to_ptr.vmem [resolvable:$true] %s43
      %49 = dma.hbm_to_vmem [thread:$0]  %s42, 256, %s44, [#allocation5], 128, 128, 8
    $region21: #{conditional_resnet_block.5} parent=1 // pred_fallthru
      _
    // Predicated region
    $region22: #{conditional_resnet_block.5} parent=1 // pred_check
      _
    $region23: #{conditional_resnet_block.5} parent=1 // pred_check_branch
      %51 = sbr.rel (0) target = $region25
    $region24: #{conditional_resnet_block.5} parent=1 // pred_region
      %53 = vsyncadd [#allocation5], 0
      %s55 = sshll.u32 %s5, 4
      %s56 = int_to_ptr.hbm [resolvable:$true] %s55
      %s57 = sshll.u32 [#allocation6], 4
      %s58 = int_to_ptr.vmem [resolvable:$true] %s57
      %60 = dma.hbm_to_vmem [thread:$0]  %s56, 32, %s58, [#allocation5]
    $region25: #{conditional_resnet_block.5} parent=1 // pred_fallthru
      _
    // Predicated region
    $region26: #{conditional_resnet_block.5} parent=1 // pred_check
      _
    $region27: #{conditional_resnet_block.5} parent=1 // pred_check_branch
      %62 = sbr.rel (0) target = $region29
    $region28: #{conditional_resnet_block.5} parent=1 // pred_region
      %64 = vsyncadd [#allocation8], 0
      %s65 = sshll.u32 %s6, 4
      %s66 = int_to_ptr.hbm [resolvable:$true] %s65
      %s67 = sshll.u32 [#allocation7], 4
      %s68 = int_to_ptr.vmem [resolvable:$true] %s67
      %73 = dma.hbm_to_vmem [thread:$0]  %s66, 1024, %s68, [#allocation8], 64, 64, 4
    $region29: #{conditional_resnet_block.5} parent=1 // pred_fallthru
      _
    // Predicated region
    $region30: #{conditional_resnet_block.5} parent=1 // pred_check
      _
    $region31: #{conditional_resnet_block.5} parent=1 // pred_check_branch
      %75 = sbr.rel (0) target = $region33
    $region32: #{conditional_resnet_block.5} parent=1 // pred_region
      %77 = vsyncadd [#allocation8], 0
      %s79 = sshll.u32 %s7, 4
      %s80 = int_to_ptr.hbm [resolvable:$true] %s79
      %s81 = sshll.u32 [#allocation9], 4
      %s82 = int_to_ptr.vmem [resolvable:$true] %s81
      %84 = dma.hbm_to_vmem [thread:$0]  %s80, 16, %s82, [#allocation8]
    $region33: #{conditional_resnet_block.5} parent=1 // pred_fallthru
      _
    // Predicated region
    $region34: #{conditional_resnet_block.5} parent=1 // pred_check
      _
    $region35: #{conditional_resnet_block.5} parent=1 // pred_check_branch
      %86 = sbr.rel (0) target = $region37
    $region36: #{conditional_resnet_block.5} parent=1 // pred_region
      %88 = vsyncadd [#allocation11], 0
      %s89 = sshll.u32 %s8, 4
      %s90 = int_to_ptr.hbm [resolvable:$true] %s89
      %s91 = sshll.u32 [#allocation10], 4
      %s92 = int_to_ptr.vmem [resolvable:$true] %s91
      %97 = dma.hbm_to_vmem [thread:$0]  %s90, 256, %s92, [#allocation11], 64, 64, 4
    $region37: #{conditional_resnet_block.5} parent=1 // pred_fallthru
      _
    // Predicated region
    $region38: #{conditional_resnet_block.5} parent=1 // pred_check
      _
    $region39: #{conditional_resnet_block.5} parent=1 // pred_check_branch
      %99 = sbr.rel (0) target = $region41
    $region40: #{conditional_resnet_block.5} parent=1 // pred_region
      %101 = dma.done [#allocation3], 256
    $region41: #{conditional_resnet_block.5} parent=1 // pred_fallthru
      _
    // Predicated region
    $region42: #{conditional_resnet_block.5} parent=1 // pred_check
      _
    $region43: #{conditional_resnet_block.5} parent=1 // pred_check_branch
      %103 = sbr.rel (0) target = $region45
    $region44: #{conditional_resnet_block.5} parent=1 // pred_region
      %105 = dma.done [#allocation5], 256
    $region45: #{conditional_resnet_block.5} parent=1 // pred_fallthru
      _
    // Predicated region
    $region46: #{conditional_resnet_block.5} parent=1 // pred_check
      _
    $region47: #{conditional_resnet_block.5} parent=1 // pred_check_branch
      %107 = sbr.rel (0) target = $region49
    $region48: #{conditional_resnet_block.5} parent=1 // pred_region
      %109 = dma.done [#allocation5], 32
    $region49: #{conditional_resnet_block.5} parent=1 // pred_fallthru
      _
    // Predicated region
    $region50: #{conditional_resnet_block.5} parent=1 // pred_check
      _
    $region51: #{conditional_resnet_block.5} parent=1 // pred_check_branch
      %111 = sbr.rel (0) target = $region53
    $region52: #{conditional_resnet_block.5} parent=1 // pred_region
      %113 = dma.done [#allocation8], 1024
    $region53: #{conditional_resnet_block.5} parent=1 // pred_fallthru
      _
    // Predicated region
    $region54: #{conditional_resnet_block.5} parent=1 // pred_check
      _
    $region55: #{conditional_resnet_block.5} parent=1 // pred_check_branch
      %115 = sbr.rel (0) target = $region57
    $region56: #{conditional_resnet_block.5} parent=1 // pred_region
      %117 = dma.done [#allocation8], 16
    $region57: #{conditional_resnet_block.5} parent=1 // pred_fallthru
      _
    // Predicated region
    $region58: #{conditional_resnet_block.5} parent=1 // pred_check
      _
    $region59: #{conditional_resnet_block.5} parent=1 // pred_check_branch
      %119 = sbr.rel (0) target = $region61
    $region60: #{conditional_resnet_block.5} parent=1 // pred_region
      %121 = dma.done [#allocation11], 256
    $region61: #{conditional_resnet_block.5} parent=1 // pred_fallthru
      _
    %v123 = vld [vmem:[%s2] sm:$0xf]
    %v124 = vld [vmem:[%s2 + $0x4] sm:$0xf]
    %v125 = vunpack.c.l.bf16 %v123
    %v126 = vunpack.c.l.bf16 %v124
    %v127 = vld [vmem:[#allocation2] sm:$0xff]
    %v128 = vld [vmem:[#allocation2 + $0x8] sm:$0xff]
    %v129 = vpack.c.bf16 %v128, %v127
    %v130 = vld [vmem:[#allocation4] sm:$0xff]
    %v131 = vld [vmem:[#allocation4 + $0x8] sm:$0xff]
    %v132 = vld [vmem:[#allocation6] sm:$0x3]
    %v134 = vperm.slane %v132, 0
    %v135 = vperm.slane %v132, 1
    %v140 = vunpack.c.l.b16 %v130
    %v141 = vunpack.c.h.b16 %v130
    %v142 = vunpack.c.l.b16 %v131
    %v143 = vunpack.c.h.b16 %v131
    %v144 = vpack.c.b16 %v142, %v140
    %v145 = vpack.c.b16 %v143, %v141
    %vm148 = vcmask 130048
    %v150 = vsel %vm148, %v129, 0
    %152 = vmatpush.bf16.msra.mxu0 0
    %153 = vmatpush.bf16.msra.mxu0 0
    %154 = vmatpush.bf16.msra.mxu0 0
    %155 = vmatpush.bf16.msra.mxu0 0
    %156 = vmatpush.bf16.msra.mxu0 0
    %157 = vmatpush.bf16.msra.mxu0 0
    %158 = vmatpush.bf16.msra.mxu0 0
    %159 = vmatpush.bf16.msra.mxu0 %v144
    %160 = vmatmul.bf16.gmra.mxu0 %v150
    %v161 = vpop.f32.mrf.mxu0
    %v162 = vadd.f32 %v134, %v161
    %v163 = vpop.f32.mrf.mxu0
    %v164 = vadd.f32 %v134, %v163
    %165 = vdwg.mxu0
    %166 = vmatpush.bf16.msra.mxu0 0
    %167 = vmatpush.bf16.msra.mxu0 0
    %168 = vmatpush.bf16.msra.mxu0 0
    %169 = vmatpush.bf16.msra.mxu0 0
    %170 = vmatpush.bf16.msra.mxu0 0
    %171 = vmatpush.bf16.msra.mxu0 0
    %172 = vmatpush.bf16.msra.mxu0 0
    %173 = vmatpush.bf16.msra.mxu0 %v145
    %174 = vmatmul.bf16.gmra.mxu0 %v150
    %v175 = vpop.f32.mrf.mxu0
    %v176 = vadd.f32 %v135, %v175
    %v177 = vpop.f32.mrf.mxu0
    %v178 = vadd.f32 %v135, %v177
    %179 = vdwg.mxu0
    %v180 = vld [vmem:[%s3] sm:$0x1]
    %v181 = vperm.slane %v180, 0
    %v182 = vsub.f32 %v125, %v181
    %v183 = vsub.f32 %v126, %v181
    %v184 = vld [vmem:[%s3 + $0x1] sm:$0x1]
    %v185 = vperm.slane %v184, 0
    %v186 = vmul.f32 %v182, %v185
    %v187 = vmul.f32 %v183, %v185
    %v188 = vmul.f32 %v162, %v186
    %v189 = vmul.f32 %v164, %v187
    %v190 = vadd.f32 %v188, %v176
    %v191 = vadd.f32 %v189, %v178
    %v192 = vmax.f32 %v190, 0.0
    %v193 = vmax.f32 %v191, 0.0
    %v194 = vpack.c.bf16 %v193, %v192
    %v195 = vld [vmem:[#allocation7] sm:$0xf]
    %v196 = vld [vmem:[#allocation7 + $0x4] sm:$0xf]
    %v197 = vld [vmem:[#allocation7 + $0x8] sm:$0xf]
    %v198 = vld [vmem:[#allocation7 + $0xc] sm:$0xf]
    %v199 = vld [vmem:[#allocation7 + $0x10] sm:$0xf]
    %v200 = vld [vmem:[#allocation7 + $0x14] sm:$0xf]
    %v201 = vld [vmem:[#allocation7 + $0x18] sm:$0xf]
    %v202 = vld [vmem:[#allocation7 + $0x1c] sm:$0xf]
    %v203 = vld [vmem:[#allocation7 + $0x20] sm:$0xf]
    %v204 = vld [vmem:[#allocation7 + $0x24] sm:$0xf]
    %v205 = vld [vmem:[#allocation7 + $0x28] sm:$0xf]
    %v206 = vld [vmem:[#allocation7 + $0x2c] sm:$0xf]
    %v207 = vld [vmem:[#allocation7 + $0x30] sm:$0xf]
    %v208 = vld [vmem:[#allocation7 + $0x34] sm:$0xf]
    %v209 = vld [vmem:[#allocation7 + $0x38] sm:$0xf]
    %v210 = vld [vmem:[#allocation7 + $0x3c] sm:$0xf]
    %v211 = vld [vmem:[#allocation9] sm:$0x1]
    %v213 = vperm.slane %v211, 0
    %v231 = vunpack.c.l.b16 %v195
    %v232 = vunpack.c.l.b16 %v196
    %v233 = vunpack.c.l.b16 %v197
    %v234 = vunpack.c.l.b16 %v198
    %v235 = vunpack.c.l.b16 %v199
    %v236 = vunpack.c.l.b16 %v200
    %v237 = vunpack.c.l.b16 %v201
    %v238 = vunpack.c.l.b16 %v202
    %v239 = vunpack.c.l.b16 %v203
    %v240 = vunpack.c.l.b16 %v204
    %v241 = vunpack.c.l.b16 %v205
    %v242 = vunpack.c.l.b16 %v206
    %v243 = vunpack.c.l.b16 %v207
    %v244 = vunpack.c.l.b16 %v208
    %v245 = vunpack.c.l.b16 %v209
    %v246 = vunpack.c.l.b16 %v210
    %v247 = vpack.c.b16 %v232, %v231
    %v248 = vpack.c.b16 %v234, %v233
    %v249 = vpack.c.b16 %v236, %v235
    %v250 = vpack.c.b16 %v238, %v237
    %v251 = vpack.c.b16 %v240, %v239
    %v252 = vpack.c.b16 %v242, %v241
    %v253 = vpack.c.b16 %v244, %v243
    %v254 = vpack.c.b16 %v246, %v245
    %263 = vmatpush.bf16.msra.mxu0 %v254
    %264 = vmatpush.bf16.msra.mxu0 %v253
    %265 = vmatpush.bf16.msra.mxu0 %v252
    %266 = vmatpush.bf16.msra.mxu0 %v251
    %267 = vmatpush.bf16.msra.mxu0 %v250
    %268 = vmatpush.bf16.msra.mxu0 %v249
    %269 = vmatpush.bf16.msra.mxu0 %v248
    %270 = vmatpush.bf16.msra.mxu0 %v247
    %271 = vmatmul.bf16.gmra.mxu0 %v194
    %v272 = vpop.f32.mrf.mxu0
    %v273 = vadd.f32 %v213, %v272
    %v274 = vpop.f32.mrf.mxu0
    %v275 = vadd.f32 %v213, %v274
    %276 = vdwg.mxu0
    %v277 = vld [vmem:[%s0] sm:$0xff]
    %v278 = vld [vmem:[%s0 + $0x8] sm:$0xff]
    %v279 = vpack.c.bf16 %v278, %v277
    %v280 = vld [vmem:[#allocation10] sm:$0xf]
    %v281 = vld [vmem:[#allocation10 + $0x4] sm:$0xf]
    %v282 = vld [vmem:[#allocation10 + $0x8] sm:$0xf]
    %v283 = vld [vmem:[#allocation10 + $0xc] sm:$0xf]
    %v288 = vunpack.c.l.b16 %v280
    %v289 = vunpack.c.l.b16 %v281
    %v290 = vunpack.c.l.b16 %v282
    %v291 = vunpack.c.l.b16 %v283
    %v292 = vpack.c.b16 %v289, %v288
    %v293 = vpack.c.b16 %v291, %v290
    %vm296 = vcmask 261120
    %v298 = vsel %vm296, %v279, 0
    %300 = vmatpush.bf16.msra.mxu0 0
    %301 = vmatpush.bf16.msra.mxu0 0
    %302 = vmatpush.bf16.msra.mxu0 0
    %303 = vmatpush.bf16.msra.mxu0 0
    %304 = vmatpush.bf16.msra.mxu0 0
    %305 = vmatpush.bf16.msra.mxu0 0
    %306 = vmatpush.bf16.msra.mxu0 %v293
    %307 = vmatpush.bf16.msra.mxu0 %v292
    %308 = vmatmul.bf16.gmra.mxu0 %v298
    %v309 = vpop.f32.mrf.mxu0
    %v310 = vadd.f32 %v273, %v309
    %v311 = vpop.f32.mrf.mxu0
    %v312 = vadd.f32 %v275, %v311
    %313 = vdwg.mxu0
    %314 = vst [vmem:[%s9] sm:$0xff] %v310
    %315 = vst [vmem:[%s9 + $0x8] sm:$0xff] %v312
    // Predicated region
    $region62: #{conditional_resnet_block.5} parent=1 // pred_check
      _
    $region63: #{conditional_resnet_block.5} parent=1 // pred_check_branch
      %317 = sbr.rel (0) target = $region65
    $region64: #{conditional_resnet_block.5} parent=1 // pred_region
      _
    $region65: #{conditional_resnet_block.5} parent=1 // pred_fallthru
      _
    // Predicated region
    $region66: #{conditional_resnet_block.5} parent=1 // pred_check
      _
    $region67: #{conditional_resnet_block.5} parent=1 // pred_check_branch
      %319 = sbr.rel (0) target = $region69
    $region68: #{conditional_resnet_block.5} parent=1 // pred_region
      _
    $region69: #{conditional_resnet_block.5} parent=1 // pred_fallthru
      _
    %320 = vsyncpa [#allocation3], 1
    %321 = vsyncpa [#allocation5], 1
    %322 = vsyncpa [#allocation8], 1
    %323 = vsyncpa [#allocation11], 1

</llo_original>
